<compile_context>
chip_gen: v6e
topology: v6e:2x2x1
jax: 0.10.0
libtpu: 0.0.40
codegen_flags: <defaults>
</compile_context>

<pallas_src>
import functools

import jax
import jax.numpy as jnp
from jax.experimental import pallas as pl
from jax.experimental.pallas import tpu as pltpu


def _round_up(n, m):
    return ((n + m - 1) // m) * m


def _bf16_activation_ok():
    """bf16 VPU/EUP exists on v6e/v7x; keep f32 activations on v5e and older."""
    try:
        kind = jax.devices()[0].device_kind.lower()
    except Exception:
        return False
    return ("v6" in kind) or ("v7" in kind)


def _generator_kernel(x_ref, w1_ref, w2_ref, w3_ref, b_ref, o_ref, *,
                      hidden, out_dim, act, compute_dtype):
    """One batch tile of the fused generator MLP.

    x_ref : (TB, IN)      f32   (batch tile)
    w1_ref: (IN, H)       bf16  (VMEM-resident, constant index_map)
    w2_ref: (H, H)        bf16
    w3_ref: (H, OUT)      bf16
    b_ref : (3, L)        f32   rows = [b1 | b2 | b3], zero-padded to L lanes
    o_ref : (TB, OUT)     f32
    """
    bf16 = jnp.bfloat16
    f32 = jnp.float32

    x = x_ref[...].astype(bf16)
    w1 = w1_ref[...]
    w2 = w2_ref[...]
    w3 = w3_ref[...]
    b1 = b_ref[0:1, 0:hidden]
    b2 = b_ref[1:2, 0:hidden]
    b3 = b_ref[2:3, 0:out_dim]

    h = jnp.dot(x, w1, preferred_element_type=f32) + b1
    h = act(h.astype(compute_dtype)).astype(bf16)
    h = jnp.dot(h, w2, preferred_element_type=f32) + b2
    h = act(h.astype(compute_dtype)).astype(bf16)
    # Final layer: NO activation (Generator semantics).
    out = jnp.dot(h, w3, preferred_element_type=f32) + b3
    o_ref[...] = out.astype(o_ref.dtype)


def init_params(key, input_size, hidden_size, output_size):
    """Deterministic init mimicking nn.Linear's U(-1/sqrt(fan_in), 1/sqrt(fan_in)).

    Weights are stored transposed: (in_features, out_features); biases (out,).
    """
    ks = jax.random.split(key, 6)

    def linear(kw, kb, fan_in, fan_out):
        bound = 1.0 / jnp.sqrt(jnp.float32(fan_in))
        w = jax.random.uniform(kw, (fan_in, fan_out), jnp.float32,
                               minval=-bound, maxval=bound)
        b = jax.random.uniform(kb, (fan_out,), jnp.float32,
                               minval=-bound, maxval=bound)
        return w, b

    w1, b1 = linear(ks[0], ks[1], input_size, hidden_size)
    w2, b2 = linear(ks[2], ks[3], hidden_size, hidden_size)
    w3, b3 = linear(ks[4], ks[5], output_size and hidden_size, output_size)
    return (w1, b1, w2, b2, w3, b3)


def pack_params(params):
    """Cast weights to bf16 (host-side, once) and pack the three f32 biases into one
    small (3, L) buffer (zero-padded lanes)."""
    w1, b1, w2, b2, w3, b3 = params
    in_dim, hidden = w1.shape
    out_dim = w3.shape[1]
    bias_lanes = max(hidden, out_dim)

    def pad_row(b):
        return jnp.pad(b.reshape(1, -1), ((0, 0), (0, bias_lanes - b.shape[0])))

    packed = dict(
        w1=w1.astype(jnp.bfloat16),
        w2=w2.astype(jnp.bfloat16),
        w3=w3.astype(jnp.bfloat16),
        b=jnp.concatenate([pad_row(b1), pad_row(b2), pad_row(b3)],
                          axis=0).astype(jnp.float32),
    )
    meta = dict(in_dim=in_dim, hidden=hidden, out_dim=out_dim)
    return packed, meta


def generator_forward(x, packed, meta, *, activation=jnp.tanh, block_batch=1024,
                      compute_dtype=None):
    """Fused 3-layer generator forward. x: (B, input_size) float32 -> (B, output_size) f32."""
    batch, in_dim = x.shape
    assert in_dim == meta["in_dim"]
    hidden, out_dim = meta["hidden"], meta["out_dim"]

    if compute_dtype is None:
        compute_dtype = jnp.bfloat16 if _bf16_activation_ok() else jnp.float32

    # Batch tiling: big 8-aligned tile to amortize per-step overhead; split into at
    # least 2 grid steps when the batch allows it (v7x dual-TC sharding).
    b8 = max(8, _round_up(batch, 8))
    tb = min(_round_up(block_batch, 8), b8)
    if b8 // tb <= 1 and b8 >= 16:
        tb = _round_up(pl.cdiv(b8, 2), 8)
    b_pad = _round_up(batch, tb)
    grid = b_pad // tb

    # Row padding only when the batch is ragged w.r.t. the tile (never at the demo
    # shape, never when batch is a multiple of tb). No column padding anywhere.
    x_in = x if b_pad == batch else jnp.pad(x, ((0, b_pad - batch), (0, 0)))

    kernel = functools.partial(_generator_kernel, hidden=hidden, out_dim=out_dim,
                               act=activation, compute_dtype=compute_dtype)

    w1, w2, w3, p_b = packed["w1"], packed["w2"], packed["w3"], packed["b"]

    out = pl.pallas_call(
        kernel,
        out_shape=jax.ShapeDtypeStruct((b_pad, out_dim), jnp.float32),
        grid=(grid,),
        in_specs=[
            pl.BlockSpec((tb, in_dim), lambda i: (i, 0)),     # batch-tiled x
            pl.BlockSpec(w1.shape, lambda i: (0, 0)),         # VMEM-resident weights
            pl.BlockSpec(w2.shape, lambda i: (0, 0)),
            pl.BlockSpec(w3.shape, lambda i: (0, 0)),
            pl.BlockSpec(p_b.shape, lambda i: (0, 0)),        # packed f32 biases
        ],
        out_specs=pl.BlockSpec((tb, out_dim), lambda i: (i, 0)),
        compiler_params=pltpu.CompilerParams(
            dimension_semantics=("parallel",)),
    )(x_in, w1, w2, w3, p_b)

    return out if b_pad == batch else out[:batch]


def reference_forward(x, params, *, activation=jnp.tanh):
    w1, b1, w2, b2, w3, b3 = params
    h = activation(x @ w1 + b1)
    h = activation(h @ w2 + b2)
    return h @ w3 + b3   # no activation on the last layer


if __name__ == "__main__":
    # Small shapes consistent with the GAN generator:
    # batch=8, input_size=4 (latent), hidden_size=32, output_size=2 (2-D samples)
    batch, input_size, hidden_size, output_size = 8, 4, 32, 2
    activation = jnp.tanh   # the script passes f (torch.tanh) to the Generator

    key = jax.random.PRNGKey(0)
    kx, kp = jax.random.split(key)
    x = jax.random.normal(kx, (batch, input_size), jnp.float32)
    params = init_params(kp, input_size, hidden_size, output_size)

    packed, meta = pack_params(params)
    out = generator_forward(x, packed, meta, activation=activation)
    out = jax.block_until_ready(out)

    ref = reference_forward(x, params, activation=activation)
    assert out.shape == (batch, output_size)
    max_err = jnp.max(jnp.abs(out - ref))
    # bf16 MXU operands (and bf16 tanh on v6e/v7x) with f32 accumulation.
    assert jnp.allclose(out, ref, atol=2e-2, rtol=2e-2), (
        f"mismatch: max abs err {max_err}")

    print("KERNEL_OK")
</pallas_src>

<mosaic_0001>
module attributes {stable_mosaic.version = 11 : i64} {
  func.func @_generator_kernel(%arg0: i32, %arg1: memref<8x4xf32, #tpu.memory_space<vmem>>, %arg2: memref<4x32xbf16, #tpu.memory_space<vmem>>, %arg3: memref<32x32xbf16, #tpu.memory_space<vmem>>, %arg4: memref<32x2xbf16, #tpu.memory_space<vmem>>, %arg5: memref<3x32xf32, #tpu.memory_space<vmem>>, %arg6: memref<8x2xf32, #tpu.memory_space<vmem>>) attributes {dimension_semantics = [#tpu.dimension_semantics<parallel>], iteration_bounds = array<i64: 1>, scalar_prefetch = 0 : i64, scratch_operands = 0 : i64, tpu.core_type = #tpu.core_type<tc>, window_params = [{transform_indices = @transform_0, window_bounds = array<i64: 8, 4>}, {pipeline_mode = #tpu.pipeline_mode<synchronous>, transform_indices = @transform_1, window_bounds = array<i64: 4, 32>}, {pipeline_mode = #tpu.pipeline_mode<synchronous>, transform_indices = @transform_2, window_bounds = array<i64: 32, 32>}, {pipeline_mode = #tpu.pipeline_mode<synchronous>, transform_indices = @transform_3, window_bounds = array<i64: 32, 2>}, {pipeline_mode = #tpu.pipeline_mode<synchronous>, transform_indices = @transform_4, window_bounds = array<i64: 3, 32>}, {transform_indices = @transform_5, window_bounds = array<i64: 8, 2>}]} {
    %c0 = arith.constant 0 : index
    %c0_0 = arith.constant 0 : index
    %0 = vector.load %arg1[%c0, %c0_0] : memref<8x4xf32, #tpu.memory_space<vmem>>, vector<8x4xf32>
    %1 = arith.truncf %0 : vector<8x4xf32> to vector<8x4xbf16>
    %c0_1 = arith.constant 0 : index
    %c0_2 = arith.constant 0 : index
    %2 = vector.load %arg2[%c0_1, %c0_2] : memref<4x32xbf16, #tpu.memory_space<vmem>>, vector<4x32xbf16>
    %c0_3 = arith.constant 0 : index
    %c0_4 = arith.constant 0 : index
    %3 = vector.load %arg3[%c0_3, %c0_4] : memref<32x32xbf16, #tpu.memory_space<vmem>>, vector<32x32xbf16>
    %c0_5 = arith.constant 0 : index
    %c0_6 = arith.constant 0 : index
    %4 = vector.load %arg4[%c0_5, %c0_6] : memref<32x2xbf16, #tpu.memory_space<vmem>>, vector<32x2xbf16>
    %c0_7 = arith.constant 0 : index
    %c0_8 = arith.constant 0 : index
    %5 = vector.load %arg5[%c0_7, %c0_8] : memref<3x32xf32, #tpu.memory_space<vmem>>, vector<1x32xf32>
    %c1 = arith.constant 1 : index
    %c0_9 = arith.constant 0 : index
    %6 = vector.load %arg5[%c1, %c0_9] : memref<3x32xf32, #tpu.memory_space<vmem>>, vector<1x32xf32>
    %c2 = arith.constant 2 : index
    %c0_10 = arith.constant 0 : index
    %7 = vector.load %arg5[%c2, %c0_10] : memref<3x32xf32, #tpu.memory_space<vmem>>, vector<1x2xf32>
    %cst = arith.constant dense<0.000000e+00> : vector<8x32xf32>
    %8 = tpu.matmul %1, %2, %cst {dimension_numbers = #tpu.dot_dimension_numbers<[1], [0], [0], [1], [0, 0, 1, 1], [], []>} : vector<8x4xbf16>, vector<4x32xbf16>, vector<8x32xf32> -> vector<8x32xf32>
    %9 = vector.broadcast %5 : vector<1x32xf32> to vector<8x32xf32>
    %10 = arith.addf %8, %9 : vector<8x32xf32>
    %11 = math.tanh %10 : vector<8x32xf32>
    %12 = arith.truncf %11 : vector<8x32xf32> to vector<8x32xbf16>
    %cst_11 = arith.constant dense<0.000000e+00> : vector<8x32xf32>
    %13 = tpu.matmul %12, %3, %cst_11 {dimension_numbers = #tpu.dot_dimension_numbers<[1], [0], [0], [1], [0, 0, 1, 1], [], []>} : vector<8x32xbf16>, vector<32x32xbf16>, vector<8x32xf32> -> vector<8x32xf32>
    %14 = vector.broadcast %6 : vector<1x32xf32> to vector<8x32xf32>
    %15 = arith.addf %13, %14 : vector<8x32xf32>
    %16 = math.tanh %15 : vector<8x32xf32>
    %17 = arith.truncf %16 : vector<8x32xf32> to vector<8x32xbf16>
    %cst_12 = arith.constant dense<0.000000e+00> : vector<8x2xf32>
    %18 = tpu.matmul %17, %4, %cst_12 {dimension_numbers = #tpu.dot_dimension_numbers<[1], [0], [0], [1], [0, 0, 1, 1], [], []>} : vector<8x32xbf16>, vector<32x2xbf16>, vector<8x2xf32> -> vector<8x2xf32>
    %19 = vector.broadcast %7 : vector<1x2xf32> to vector<8x2xf32>
    %20 = arith.addf %18, %19 : vector<8x2xf32>
    %c0_13 = arith.constant 0 : index
    %c0_14 = arith.constant 0 : index
    %21 = vector.load %arg6[%c0_13, %c0_14] : memref<8x2xf32, #tpu.memory_space<vmem>>, vector<8x2xf32>
    tpu.vector_store %arg6[%c0_13, %c0_14], %20 {strides = array<i32>} : memref<8x2xf32, #tpu.memory_space<vmem>>, vector<8x2xf32>,
    return
  }
  func.func @transform_0(%arg0: i32) -> (i32, i32) {
    %c0_i32 = arith.constant 0 : i32
    %c0_i32_0 = arith.constant 0 : i32
    return %arg0, %c0_i32 : i32, i32
  }
  func.func @transform_1(%arg0: i32) -> (i32, i32) {
    %c0_i32 = arith.constant 0 : i32
    %c0_i32_0 = arith.constant 0 : i32
    %c0_i32_1 = arith.constant 0 : i32
    return %c0_i32, %c0_i32_0 : i32, i32
  }
  func.func @transform_2(%arg0: i32) -> (i32, i32) {
    %c0_i32 = arith.constant 0 : i32
    %c0_i32_0 = arith.constant 0 : i32
    %c0_i32_1 = arith.constant 0 : i32
    return %c0_i32, %c0_i32_0 : i32, i32
  }
  func.func @transform_3(%arg0: i32) -> (i32, i32) {
    %c0_i32 = arith.constant 0 : i32
    %c0_i32_0 = arith.constant 0 : i32
    %c0_i32_1 = arith.constant 0 : i32
    return %c0_i32, %c0_i32_0 : i32, i32
  }
  func.func @transform_4(%arg0: i32) -> (i32, i32) {
    %c0_i32 = arith.constant 0 : i32
    %c0_i32_0 = arith.constant 0 : i32
    %c0_i32_1 = arith.constant 0 : i32
    return %c0_i32, %c0_i32_0 : i32, i32
  }
  func.func @transform_5(%arg0: i32) -> (i32, i32) {
    %c0_i32 = arith.constant 0 : i32
    %c0_i32_0 = arith.constant 0 : i32
    return %arg0, %c0_i32 : i32, i32
  }
}

</mosaic_0001>

<llo_original>
// kernel: tpu_custom_call.1
$region0: #{tpu_custom_call.1}
  #allocation0 [shape = 'u32[]', space=smem, size = 0x4, offset = 0x4, fixed_abs, tag = 'smem constant byte address 0x4 - core index']
  #allocation1 [shape = 'u32[144,128]{1,0:T(1,128)}', space=vmem, size = 0x12000, scoped, tag = 'internal scratch']
  %s0 = inlined_call_operand.vmem [shape: f32[8,4], index: 0, kind: input, shape index: {}]
  %s1 = inlined_call_operand.vmem [shape: bf16[4,32], index: 1, kind: input, shape index: {}]
  %s2 = inlined_call_operand.vmem [shape: bf16[32,32], index: 2, kind: input, shape index: {}]
  %s3 = inlined_call_operand.vmem [shape: bf16[32,2], index: 3, kind: input, shape index: {}]
  %s4 = inlined_call_operand.vmem [shape: f32[3,32], index: 4, kind: input, shape index: {}]
  %s5 = inlined_call_operand.vmem [shape: f32[8,2], index: 5, kind: output, shape index: {}]
  %s6 = sld [smem:[#allocation0]]
  $region30: #{tpu_custom_call.1} parent=0
    _
  %s8 = ssub.s32 1, %s6
  %s9 = scalar_select 0, %s8, %s6
  // Predicated region
  $region2: #{tpu_custom_call.1} parent=0 // pred_check
    _
  $region3: #{tpu_custom_call.1} parent=0 // pred_check_branch
    %11 = sbr.rel (0) target = $region5
  $region4: #{tpu_custom_call.1} parent=0 // pred_region
    _
  $region5: #{tpu_custom_call.1} parent=0 // pred_fallthru
    _
  // Predicated region
  $region6: #{tpu_custom_call.1} parent=0 // pred_check
    _
  $region7: #{tpu_custom_call.1} parent=0 // pred_check_branch
    %13 = sbr.rel (0) target = $region9
  $region8: #{tpu_custom_call.1} parent=0 // pred_region
    _
  $region9: #{tpu_custom_call.1} parent=0 // pred_fallthru
    _
  // Predicated region
  $region10: #{tpu_custom_call.1} parent=0 // pred_check
    _
  $region11: #{tpu_custom_call.1} parent=0 // pred_check_branch
    %15 = sbr.rel (0) target = $region13
  $region12: #{tpu_custom_call.1} parent=0 // pred_region
    _
  $region13: #{tpu_custom_call.1} parent=0 // pred_fallthru
    _
  // Predicated region
  $region14: #{tpu_custom_call.1} parent=0 // pred_check
    _
  $region15: #{tpu_custom_call.1} parent=0 // pred_check_branch
    %17 = sbr.rel (0) target = $region17
  $region16: #{tpu_custom_call.1} parent=0 // pred_region
    _
  $region17: #{tpu_custom_call.1} parent=0 // pred_fallthru
    _
  // Predicated region
  $region18: #{tpu_custom_call.1} parent=0 // pred_check
    _
  $region19: #{tpu_custom_call.1} parent=0 // pred_check_branch
    %19 = sbr.rel (0) target = $region21
  $region20: #{tpu_custom_call.1} parent=0 // pred_region
    _
  $region21: #{tpu_custom_call.1} parent=0 // pred_fallthru
    _
  %v21 = vld [vmem:[%s0] sm:$0xff]
  %v22 = vpack.c.bf16 %v21, %v21
  %v23 = vld [vmem:[%s1] sm:$0x3]
  %v24 = vld [vmem:[%s2] sm:$0xf]
  %v25 = vld [vmem:[%s2 + $0x4] sm:$0xf]
  %v26 = vld [vmem:[%s2 + $0x8] sm:$0xf]
  %v27 = vld [vmem:[%s2 + $0xc] sm:$0xf]
  %v28 = vld [vmem:[%s3] sm:$0xf]
  %v29 = vld [vmem:[%s3 + $0x4] sm:$0xf]
  %v30 = vld [vmem:[%s3 + $0x8] sm:$0xf]
  %v31 = vld [vmem:[%s3 + $0xc] sm:$0xf]
  %v32 = vld [vmem:[%s4] sm:$0x1]
  %v33 = vld [vmem:[%s4 + $0x1] sm:$0x1]
  %v34 = vld [vmem:[%s4 + $0x2] sm:$0x1]
  %v35 = vlaneseq
  %v36 = vshrl.u32 %v35, 7
  %v37 = vsub.s32 0, %v36
  %v38 = vrot.slane %v32, %v37
  %vm39 = vcmask 31744
  %v41 = vsel %vm39, %v22, 0
  %vm43 = vcmask 1041408
  %v45 = vsel %vm43, %v23, 0
  %47 = vmatprep.subr.bf16.mxu0 0
  %48 = vmatpush1.bf16.msra.mxu0 0
  %49 = vmatprep.subr.bf16.mxu0 0
  %50 = vmatpush1.bf16.msra.mxu0 0
  %51 = vmatprep.subr.bf16.mxu0 0
  %52 = vmatpush1.bf16.msra.mxu0 0
  %53 = vmatprep.subr.bf16.mxu0 0
  %54 = vmatpush1.bf16.msra.mxu0 0
  %55 = vmatprep.subr.bf16.mxu0 0
  %56 = vmatpush1.bf16.msra.mxu0 0
  %57 = vmatprep.subr.bf16.mxu0 0
  %58 = vmatpush1.bf16.msra.mxu0 0
  %59 = vmatprep.subr.bf16.mxu0 0
  %60 = vmatpush1.bf16.msra.mxu0 0
  %61 = vmatprep.subr.bf16.mxu0 0
  %62 = vmatpush1.bf16.msra.mxu0 %v45
  %63 = vmatprep.subr.bf16.mxu0 0
  %64 = vmatpush2.bf16.msra.mxu0 0
  %65 = vmatprep.subr.bf16.mxu0 0
  %66 = vmatpush2.bf16.msra.mxu0 0
  %67 = vmatprep.subr.bf16.mxu0 0
  %68 = vmatpush2.bf16.msra.mxu0 0
  %69 = vmatprep.subr.bf16.mxu0 0
  %70 = vmatpush2.bf16.msra.mxu0 0
  %71 = vmatprep.subr.bf16.mxu0 0
  %72 = vmatpush2.bf16.msra.mxu0 0
  %73 = vmatprep.subr.bf16.mxu0 0
  %74 = vmatpush2.bf16.msra.mxu0 0
  %75 = vmatprep.subr.bf16.mxu0 0
  %76 = vmatpush2.bf16.msra.mxu0 0
  %77 = vmatprep.subr.bf16.mxu0 0
  %78 = vmatpush2.bf16.msra.mxu0 0
  %79 = vmatprep.mubr.bf16.mxu0 0
  %80 = vmatmul.mubr.bf16.gmra.mxu0 %v41
  %v81 = vpop.f32.mrf.mxu0
  %v82 = vadd.f32 %v38, %v81
  %v83 = vpop.f32.mrf.mxu0
  %v84 = vpop.f32.mrf.mxu0
  %v85 = vpop.f32.mrf.mxu0
  %86 = vdwg.mxu0
  %v87 = vtanh.pop %v82
  %v88 = vpack.c.bf16 %v87, %v87
  %v89 = vlaneseq
  %v90 = vshrl.u32 %v89, 7
  %v91 = vsub.s32 0, %v90
  %v92 = vrot.slane %v33, %v91
  %v97 = vunpack.c.l.b16 %v24
  %v98 = vunpack.c.l.b16 %v25
  %v99 = vunpack.c.l.b16 %v26
  %v100 = vunpack.c.l.b16 %v27
  %v101 = vpack.c.b16 %v98, %v97
  %v102 = vpack.c.b16 %v100, %v99
  %vm105 = vcmask 261120
  %v107 = vsel %vm105, %v88, 0
  %109 = vmatprep.subr.bf16.mxu0 0
  %110 = vmatpush1.bf16.msra.mxu0 0
  %111 = vmatprep.subr.bf16.mxu0 0
  %112 = vmatpush1.bf16.msra.mxu0 0
  %113 = vmatprep.subr.bf16.mxu0 0
  %114 = vmatpush1.bf16.msra.mxu0 0
  %115 = vmatprep.subr.bf16.mxu0 0
  %116 = vmatpush1.bf16.msra.mxu0 0
  %117 = vmatprep.subr.bf16.mxu0 0
  %118 = vmatpush1.bf16.msra.mxu0 0
  %119 = vmatprep.subr.bf16.mxu0 0
  %120 = vmatpush1.bf16.msra.mxu0 0
  %121 = vmatprep.subr.bf16.mxu0 0
  %122 = vmatpush1.bf16.msra.mxu0 %v102
  %123 = vmatprep.subr.bf16.mxu0 0
  %124 = vmatpush1.bf16.msra.mxu0 %v101
  %125 = vmatprep.subr.bf16.mxu0 0
  %126 = vmatpush2.bf16.msra.mxu0 0
  %127 = vmatprep.subr.bf16.mxu0 0
  %128 = vmatpush2.bf16.msra.mxu0 0
  %129 = vmatprep.subr.bf16.mxu0 0
  %130 = vmatpush2.bf16.msra.mxu0 0
  %131 = vmatprep.subr.bf16.mxu0 0
  %132 = vmatpush2.bf16.msra.mxu0 0
  %133 = vmatprep.subr.bf16.mxu0 0
  %134 = vmatpush2.bf16.msra.mxu0 0
  %135 = vmatprep.subr.bf16.mxu0 0
  %136 = vmatpush2.bf16.msra.mxu0 0
  %137 = vmatprep.subr.bf16.mxu0 0
  %138 = vmatpush2.bf16.msra.mxu0 0
  %139 = vmatprep.subr.bf16.mxu0 0
  %140 = vmatpush2.bf16.msra.mxu0 0
  %141 = vmatprep.mubr.bf16.mxu0 0
  %142 = vmatmul.mubr.bf16.gmra.mxu0 %v107
  %v143 = vpop.f32.mrf.mxu0
  %v144 = vadd.f32 %v92, %v143
  %v145 = vpop.f32.mrf.mxu0
  %v146 = vpop.f32.mrf.mxu0
  %v147 = vpop.f32.mrf.mxu0
  %148 = vdwg.mxu0
  %v149 = vtanh.pop %v144
  %v150 = vpack.c.bf16 %v149, %v149
  %v151 = vlaneseq
  %v152 = vshrl.u32 %v151, 7
  %v153 = vsub.s32 0, %v152
  %v154 = vrot.slane %v34, %v153
  %v159 = vunpack.c.l.b16 %v28
  %v160 = vunpack.c.l.b16 %v29
  %v161 = vunpack.c.l.b16 %v30
  %v162 = vunpack.c.l.b16 %v31
  %v163 = vpack.c.b16 %v160, %v159
  %v164 = vpack.c.b16 %v162, %v161
  %v168 = vsel %vm105, %v150, 0
  %170 = vmatprep.subr.bf16.mxu0 0
  %171 = vmatpush1.bf16.msra.mxu0 0
  %172 = vmatprep.subr.bf16.mxu0 0
  %173 = vmatpush1.bf16.msra.mxu0 0
  %174 = vmatprep.subr.bf16.mxu0 0
  %175 = vmatpush1.bf16.msra.mxu0 0
  %176 = vmatprep.subr.bf16.mxu0 0
  %177 = vmatpush1.bf16.msra.mxu0 0
  %178 = vmatprep.subr.bf16.mxu0 0
  %179 = vmatpush1.bf16.msra.mxu0 0
  %180 = vmatprep.subr.bf16.mxu0 0
  %181 = vmatpush1.bf16.msra.mxu0 0
  %182 = vmatprep.subr.bf16.mxu0 0
  %183 = vmatpush1.bf16.msra.mxu0 %v164
  %184 = vmatprep.subr.bf16.mxu0 0
  %185 = vmatpush1.bf16.msra.mxu0 %v163
  %186 = vmatprep.subr.bf16.mxu0 0
  %187 = vmatpush2.bf16.msra.mxu0 0
  %188 = vmatprep.subr.bf16.mxu0 0
  %189 = vmatpush2.bf16.msra.mxu0 0
  %190 = vmatprep.subr.bf16.mxu0 0
  %191 = vmatpush2.bf16.msra.mxu0 0
  %192 = vmatprep.subr.bf16.mxu0 0
  %193 = vmatpush2.bf16.msra.mxu0 0
  %194 = vmatprep.subr.bf16.mxu0 0
  %195 = vmatpush2.bf16.msra.mxu0 0
  %196 = vmatprep.subr.bf16.mxu0 0
  %197 = vmatpush2.bf16.msra.mxu0 0
  %198 = vmatprep.subr.bf16.mxu0 0
  %199 = vmatpush2.bf16.msra.mxu0 0
  %200 = vmatprep.subr.bf16.mxu0 0
  %201 = vmatpush2.bf16.msra.mxu0 0
  %202 = vmatprep.mubr.bf16.mxu0 0
  %203 = vmatmul.mubr.bf16.gmra.mxu0 %v168
  %v204 = vpop.f32.mrf.mxu0
  %v205 = vadd.f32 %v154, %v204
  %v206 = vpop.f32.mrf.mxu0
  %v207 = vpop.f32.mrf.mxu0
  %v208 = vpop.f32.mrf.mxu0
  %209 = vdwg.mxu0
  %vm210 = vcmask 15360
  %211 = vst.msk [vmem:[%s5] sm:$0xff] %vm210, %v205
  // Predicated region
  $region22: #{tpu_custom_call.1} parent=0 // pred_check
    _
  $region23: #{tpu_custom_call.1} parent=0 // pred_check_branch
    %213 = sbr.rel (0) target = $region25
  $region24: #{tpu_custom_call.1} parent=0 // pred_region
    _
  $region25: #{tpu_custom_call.1} parent=0 // pred_fallthru
    _
  // Predicated region
  $region26: #{tpu_custom_call.1} parent=0 // pred_check
    _
  $region27: #{tpu_custom_call.1} parent=0 // pred_check_branch
    %215 = sbr.rel (0) target = $region29
  $region28: #{tpu_custom_call.1} parent=0 // pred_region
    _
  $region29: #{tpu_custom_call.1} parent=0 // pred_fallthru
    _

</llo_original>
